<compile_context>
chip_gen: v5e
topology: v5e:2x2
jax: 0.10.0
libtpu: 0.0.40
codegen_flags: <defaults>
</compile_context>

<pallas_src>
import functools
import math

import jax
import jax.numpy as jnp
from jax.experimental import pallas as pl
from jax.experimental.pallas import tpu as pltpu


def _rmsnorm_kernel(x_ref, w_ref, o_ref, *, eps: float, inv_dim: float):
    # x_ref: (TILE_ROWS, DIM), w_ref: (1, DIM), o_ref: (TILE_ROWS, DIM)
    x = x_ref[...]
    xf = x.astype(jnp.float32)                                   # x.float()
    ms = jnp.sum(xf * xf, axis=-1, keepdims=True) * inv_dim      # mean over true dim
    normed = xf * jax.lax.rsqrt(ms + eps)                        # fp32
    if x.dtype != jnp.float32:
        # torch parity: .type_as(x) happens before multiplying by fp32 weight.
        normed = normed.astype(x.dtype).astype(jnp.float32)
    o_ref[...] = (normed * w_ref[...]).astype(o_ref.dtype)


def _round_up(x: int, m: int) -> int:
    return ((x + m - 1) // m) * m


def _vmem_capacity_bytes() -> int:
    """Per-core VMEM capacity; conservative fallback = v7x's 64 MiB/TC."""
    try:
        return int(pltpu.get_tpu_info().vmem_capacity_bytes)
    except Exception:
        return 64 << 20


def rmsnorm(
    x: jax.Array,
    weight: jax.Array,
    eps: float,
    *,
    tile_rows: int | None = None,
    out_dtype=None,
    input_buffer_count: int = 2,
):
    """RMSNorm over the last axis of x. x: [..., dim], weight: [dim].

    out_dtype=None keeps torch parity (fp32 weight promotes the result to
    fp32); pass e.g. jnp.bfloat16 to halve write bandwidth when downstream
    can consume it.
    """
    orig_shape = x.shape
    dim = orig_shape[-1]
    rows = math.prod(orig_shape[:-1]) if len(orig_shape) > 1 else 1
    x2d = x.reshape(rows, dim)

    if out_dtype is None:
        out_dtype = jnp.promote_types(x.dtype, jnp.float32)  # torch parity
    x_bytes = jnp.dtype(x.dtype).itemsize
    out_bytes = jnp.dtype(out_dtype).itemsize

    # VMEM pads the lane (last) dim of a block up to 128 — account for that
    # in buffer sizing even though we never pad the array itself.
    dim_vmem = _round_up(dim, 128)

    # Sublane packing: 8 rows (fp32) / 16 (bf16) / 32 (int8/fp8).
    sublane = max(8, 32 // x_bytes, 32 // out_bytes)

    # Generation-aware pipeline budget (~60% of per-core VMEM).
    vmem_cap = _vmem_capacity_bytes()
    budget = int(vmem_cap * 0.60)
    in_bufs = max(2, int(input_buffer_count))
    per_row = dim_vmem * (in_bufs * x_bytes + 2 * out_bytes)
    max_rows_budget = max(sublane, budget // per_row)

    if tile_rows is None:
        # Tile-size roofline plateaus around ~512 rows; bigger only adds VMEM.
        tile_rows = min(512, int(max_rows_budget))
    else:
        # Clamp caller-supplied tiles against the same budget (robustness).
        tile_rows = min(int(tile_rows), int(max_rows_budget))
    tile_rows = max(sublane, (int(tile_rows) // sublane) * sublane)
    if tile_rows >= rows:
        # Single block covering all rows: block dim == full array dim is
        # always a legal block shape, and avoids any padding.
        tile_rows = rows

    grid = (pl.cdiv(rows, tile_rows),)  # partial last block OK (rows indep.)

    w2d = weight.astype(jnp.float32).reshape(1, dim)

    # Explicit VMEM limit from the actual pipeline buffers (+ headroom),
    # capped below physical capacity for the current generation.
    pipeline_bytes = (
        _round_up(max(tile_rows, 1), sublane) * dim_vmem
        * (in_bufs * x_bytes + 2 * out_bytes)
        + 2 * dim_vmem * 4  # weight double buffer (fp32)
    )
    vmem_limit = int(min(max(pipeline_bytes + (4 << 20), 16 << 20),
                         int(vmem_cap * 0.9)))

    x_spec_kwargs = {}
    if in_bufs != 2:
        # Optional deeper pipelining for short-dim shapes (v7x).
        x_spec_kwargs["pipeline_mode"] = pl.Buffered(in_bufs)

    out = pl.pallas_call(
        functools.partial(_rmsnorm_kernel, eps=float(eps), inv_dim=1.0 / dim),
        out_shape=jax.ShapeDtypeStruct((rows, dim), out_dtype),
        grid_spec=pltpu.PrefetchScalarGridSpec(
            num_scalar_prefetch=0,
            grid=grid,
            in_specs=[
                pl.BlockSpec((tile_rows, dim), lambda i: (i, 0), **x_spec_kwargs),
                # Constant block index -> weight is DMA'd once and stays
                # VMEM-resident across the whole grid.
                pl.BlockSpec((1, dim), lambda i: (0, 0)),
            ],
            out_specs=pl.BlockSpec((tile_rows, dim), lambda i: (i, 0)),
        ),
        compiler_params=pltpu.CompilerParams(
            dimension_semantics=("parallel",),
            vmem_limit_bytes=vmem_limit,
        ),
    )(x2d, w2d)

    return out.reshape(orig_shape[:-1] + (dim,))


def rmsnorm_ref(x, weight, eps):
    xf = x.astype(jnp.float32)
    normed = (xf * jax.lax.rsqrt(jnp.mean(xf * xf, axis=-1, keepdims=True) + eps)
              ).astype(x.dtype)
    return normed.astype(jnp.float32) * weight.astype(jnp.float32)


if __name__ == "__main__":
    key = jax.random.PRNGKey(0)
    eps = 1e-5
    k1, k2, k3, k4, k5, kw = jax.random.split(key, 6)

    # Case 1: fp32, aligned shapes (batch=2, seq=8, dim=128), non-trivial weight.
    x1 = jax.random.normal(k1, (2, 8, 128), dtype=jnp.float32)
    w1 = 1.0 + 0.1 * jax.random.normal(kw, (128,), dtype=jnp.float32)
    o1 = jax.block_until_ready(rmsnorm(x1, w1, eps))
    r1 = rmsnorm_ref(x1, w1, eps)
    assert o1.shape == x1.shape and o1.dtype == jnp.float32
    assert jnp.allclose(o1, r1, atol=1e-4, rtol=1e-4), "fp32 mismatch vs reference"

    # Case 2: bf16 input (sublane packing = 16), dim=256, torch-parity fp32 out.
    x2 = jax.random.normal(k2, (2, 8, 256), dtype=jnp.float32).astype(jnp.bfloat16)
    w2 = jnp.ones((256,), dtype=jnp.float32)
    o2 = jax.block_until_ready(rmsnorm(x2, w2, eps))
    r2 = rmsnorm_ref(x2, w2, eps)
    assert o2.shape == x2.shape and o2.dtype == jnp.float32
    assert jnp.allclose(o2, r2, atol=2e-2, rtol=2e-2), "bf16 mismatch vs reference"

    # Case 3: ragged rows (3*5=15) and non-128-multiple dim (96) — no padding,
    # block last dim == full array dim, single full-extent row block.
    x3 = jax.random.normal(k3, (3, 5, 96), dtype=jnp.float32)
    w3 = 1.0 + 0.05 * jax.random.normal(k5, (96,), dtype=jnp.float32)
    o3 = jax.block_until_ready(rmsnorm(x3, w3, eps))
    r3 = rmsnorm_ref(x3, w3, eps)
    assert o3.shape == x3.shape
    assert jnp.allclose(o3, r3, atol=1e-4, rtol=1e-4), "ragged mismatch vs reference"

    # Case 4: partial last grid block (rows=40, tile_rows=16 -> grid=3).
    x4 = jax.random.normal(k4, (4, 10, 128), dtype=jnp.float32)
    o4 = jax.block_until_ready(rmsnorm(x4, w1, eps, tile_rows=16))
    r4 = rmsnorm_ref(x4, w1, eps)
    assert o4.shape == x4.shape
    assert jnp.allclose(o4, r4, atol=1e-4, rtol=1e-4), "partial-block mismatch"

    # Case 5: bf16 output option (halved write bandwidth, non-torch-parity).
    x5 = jax.random.normal(k5, (2, 8, 128), dtype=jnp.float32).astype(jnp.bfloat16)
    o5 = jax.block_until_ready(rmsnorm(x5, w1, eps, out_dtype=jnp.bfloat16))
    r5 = rmsnorm_ref(x5, w1, eps).astype(jnp.bfloat16)
    assert o5.dtype == jnp.bfloat16 and o5.shape == x5.shape
    assert jnp.allclose(o5.astype(jnp.float32), r5.astype(jnp.float32),
                        atol=3e-2, rtol=3e-2), "bf16-out mismatch vs reference"

    print("KERNEL_OK")
</pallas_src>

<mosaic_0001>
module attributes {stable_mosaic.version = 11 : i64} {
  func.func @_rmsnorm_kernel(%arg0: i32, %arg1: memref<16x128xf32, #tpu.memory_space<vmem>>, %arg2: memref<1x128xf32, #tpu.memory_space<vmem>>, %arg3: memref<16x128xf32, #tpu.memory_space<vmem>>) attributes {dimension_semantics = [#tpu.dimension_semantics<parallel>], iteration_bounds = array<i64: 1>, scalar_prefetch = 0 : i64, scratch_operands = 0 : i64, tpu.core_type = #tpu.core_type<tc>, window_params = [{transform_indices = @transform_0, window_bounds = array<i64: 16, 128>}, {pipeline_mode = #tpu.pipeline_mode<synchronous>, transform_indices = @transform_1, window_bounds = array<i64: 1, 128>}, {transform_indices = @transform_2, window_bounds = array<i64: 16, 128>}]} {
    %c0 = arith.constant 0 : index
    %c0_0 = arith.constant 0 : index
    %0 = vector.load %arg1[%c0, %c0_0] : memref<16x128xf32, #tpu.memory_space<vmem>>, vector<16x128xf32>
    %1 = arith.mulf %0, %0 : vector<16x128xf32>
    %cst = arith.constant dense<0.000000e+00> : vector<16xf32>
    %2 = vector.multi_reduction <add>, %1, %cst [1] : vector<16x128xf32> to vector<16xf32>
    %3 = vector.shape_cast %2 : vector<16xf32> to vector<16x1xf32>
    %cst_1 = arith.constant 7.812500e-03 : f32
    %4 = vector.broadcast %cst_1 : f32 to vector<16x1xf32>
    %5 = arith.mulf %3, %4 : vector<16x1xf32>
    %cst_2 = arith.constant 9.99999974E-6 : f32
    %6 = vector.broadcast %cst_2 : f32 to vector<16x1xf32>
    %7 = arith.addf %5, %6 : vector<16x1xf32>
    %8 = math.rsqrt %7 : vector<16x1xf32>
    %9 = vector.broadcast %8 : vector<16x1xf32> to vector<16x128xf32>
    %10 = arith.mulf %0, %9 : vector<16x128xf32>
    %c0_3 = arith.constant 0 : index
    %c0_4 = arith.constant 0 : index
    %11 = vector.load %arg2[%c0_3, %c0_4] : memref<1x128xf32, #tpu.memory_space<vmem>>, vector<1x128xf32>
    %12 = vector.broadcast %11 : vector<1x128xf32> to vector<16x128xf32>
    %13 = arith.mulf %10, %12 : vector<16x128xf32>
    %c0_5 = arith.constant 0 : index
    %c0_6 = arith.constant 0 : index
    %14 = vector.load %arg3[%c0_5, %c0_6] : memref<16x128xf32, #tpu.memory_space<vmem>>, vector<16x128xf32>
    tpu.vector_store %arg3[%c0_5, %c0_6], %13 {strides = array<i32>} : memref<16x128xf32, #tpu.memory_space<vmem>>, vector<16x128xf32>,
    return
  }
  func.func @transform_0(%arg0: i32) -> (i32, i32) {
    %c0_i32 = arith.constant 0 : i32
    %c0_i32_0 = arith.constant 0 : i32
    return %arg0, %c0_i32 : i32, i32
  }
  func.func @transform_1(%arg0: i32) -> (i32, i32) {
    %c0_i32 = arith.constant 0 : i32
    %c0_i32_0 = arith.constant 0 : i32
    %c0_i32_1 = arith.constant 0 : i32
    return %c0_i32, %c0_i32_0 : i32, i32
  }
  func.func @transform_2(%arg0: i32) -> (i32, i32) {
    %c0_i32 = arith.constant 0 : i32
    %c0_i32_0 = arith.constant 0 : i32
    return %arg0, %c0_i32 : i32, i32
  }
}

</mosaic_0001>

<llo_original>
// kernel: tpu_custom_call.1
$region0: #{tpu_custom_call.1}
  #allocation0 [shape = 'u32[]', space=smem, size = 0x4, offset = 0x4, fixed_abs, tag = 'smem constant byte address 0x4 - core index']
  #allocation1 [shape = 'u32[72,128]{1,0:T(1,128)}', space=vmem, size = 0x9000, scoped, tag = 'internal scratch']
  %s0 = inlined_call_operand.hbm [shape: f32[16,128], index: 0, kind: input, shape index: {}]
  %s1 = inlined_call_operand.hbm [shape: f32[1,128], index: 1, kind: input, shape index: {}]
  %s2 = inlined_call_operand.hbm [shape: f32[16,128], index: 2, kind: output, shape index: {}]
  %s3 = sld [smem:[#allocation0]]
  $region26: #{tpu_custom_call.1} parent=0
    _
  %s5 = ssub.s32 1, %s3
  %s6 = scalar_select 0, %s5, %s3
  $region1: #{tpu_custom_call.1} parent=0
    #allocation2 [shape = 'u8[8192]{0}', space=vmem, size = 0x2000, scoped, tag = 'input window, operand 0, single buffered']
    #allocation3 [shape = 's32[1]{0}', space=sflag, size = 0x4, scoped, tag = 'scoped memory for tpu_custom_call.1']
    #allocation4 [shape = 's32[1]{0}', space=sflag, size = 0x4, scoped, tag = 'scoped memory for tpu_custom_call.1']
    #allocation5 [shape = 'u8[512]{0}', space=vmem, size = 0x400, scoped, tag = 'input window, operand 1, single buffered']
    #allocation6 [shape = 's32[1]{0}', space=sflag, size = 0x4, scoped, tag = 'scoped memory for tpu_custom_call.1']
    #allocation7 [shape = 'u8[8192]{0}', space=vmem, size = 0x2000, scoped, tag = 'output window, operand 0, single buffered']
    %7 = vsyncpa [#allocation3], 0
    %8 = vsyncpa [#allocation6], 0
    %9 = vsyncpa [#allocation4], 0
    // Predicated region
    $region2: #{tpu_custom_call.1} parent=1 // pred_check
      _
    $region3: #{tpu_custom_call.1} parent=1 // pred_check_branch
      %11 = sbr.rel (0) target = $region5
    $region4: #{tpu_custom_call.1} parent=1 // pred_region
      %13 = vsyncadd [#allocation3], 0
      %s14 = sshll.u32 %s0, 4
      %s15 = int_to_ptr.hbm [resolvable:$true] %s14
      %s16 = sshll.u32 [#allocation2], 4
      %s17 = int_to_ptr.vmem [resolvable:$true] %s16
      %22 = dma.hbm_to_vmem [thread:$0]  %s15, 256, %s17, [#allocation3], 128, 128, 8
    $region5: #{tpu_custom_call.1} parent=1 // pred_fallthru
      _
    // Predicated region
    $region6: #{tpu_custom_call.1} parent=1 // pred_check
      _
    $region7: #{tpu_custom_call.1} parent=1 // pred_check_branch
      %24 = sbr.rel (0) target = $region9
    $region8: #{tpu_custom_call.1} parent=1 // pred_region
      %26 = vsyncadd [#allocation6], 0
      %s28 = sshll.u32 %s1, 4
      %s29 = int_to_ptr.hbm [resolvable:$true] %s28
      %s30 = sshll.u32 [#allocation5], 4
      %s31 = int_to_ptr.vmem [resolvable:$true] %s30
      %33 = dma.hbm_to_vmem [thread:$0]  %s29, 16, %s31, [#allocation6]
    $region9: #{tpu_custom_call.1} parent=1 // pred_fallthru
      _
    // Predicated region
    $region10: #{tpu_custom_call.1} parent=1 // pred_check
      _
    $region11: #{tpu_custom_call.1} parent=1 // pred_check_branch
      %35 = sbr.rel (0) target = $region13
    $region12: #{tpu_custom_call.1} parent=1 // pred_region
      %37 = dma.done [#allocation3], 256
    $region13: #{tpu_custom_call.1} parent=1 // pred_fallthru
      _
    // Predicated region
    $region14: #{tpu_custom_call.1} parent=1 // pred_check
      _
    $region15: #{tpu_custom_call.1} parent=1 // pred_check_branch
      %39 = sbr.rel (0) target = $region17
    $region16: #{tpu_custom_call.1} parent=1 // pred_region
      %41 = dma.done [#allocation6], 16
    $region17: #{tpu_custom_call.1} parent=1 // pred_fallthru
      _
    %v42 = vld [vmem:[#allocation2] sm:$0xff]
    %v43 = vld [vmem:[#allocation2 + $0x8] sm:$0xff]
    %v44 = vmul.f32 %v42, %v42
    %v45 = vmul.f32 %v43, %v43
    %46 = vadd.xlane.f32.xlu0 %v44
    %v47 = vpop.xlane.xlu0 %46
    %48 = vadd.xlane.f32.xlu0 %v45
    %v49 = vpop.xlane.xlu0 %48
    %v50 = vmul.f32 %v47, 0.0078125
    %v51 = vmul.f32 %v49, 0.0078125
    %v52 = vadd.f32 %v50, 1e-05
    %v53 = vadd.f32 %v51, 1e-05
    %v54 = vrsqrt.pop %v52
    %v55 = vmul.f32 %v54, %v52
    %v56 = vmul.f32 %v55, %v54
    %v57 = vmul.f32 0.5, %v56
    %v58 = vsub.f32 1.5, %v57
    %v59 = vmul.f32 %v54, %v58
    %vm60 = vweird.f32 %v52
    %vm61 = vweird.f32 %v54
    %vm62 = vmor %vm60, %vm61
    %v63 = vsel %vm62, %v54, %v59
    %v64 = vrsqrt.pop %v53
    %v65 = vmul.f32 %v64, %v53
    %v66 = vmul.f32 %v65, %v64
    %v67 = vmul.f32 0.5, %v66
    %v68 = vsub.f32 1.5, %v67
    %v69 = vmul.f32 %v64, %v68
    %vm70 = vweird.f32 %v53
    %vm71 = vweird.f32 %v64
    %vm72 = vmor %vm70, %vm71
    %v73 = vsel %vm72, %v64, %v69
    %v74 = vmul.f32 %v42, %v63
    %v75 = vmul.f32 %v43, %v73
    %v76 = vld [vmem:[#allocation5] sm:$0x1]
    %v78 = vperm.slane %v76, 0
    %v80 = vmul.f32 %v74, %v78
    %v81 = vmul.f32 %v75, %v78
    %82 = vst [vmem:[#allocation7] sm:$0xff] %v80
    %83 = vst [vmem:[#allocation7 + $0x8] sm:$0xff] %v81
    // Predicated region
    $region18: #{tpu_custom_call.1} parent=1 // pred_check
      _
    $region19: #{tpu_custom_call.1} parent=1 // pred_check_branch
      %85 = sbr.rel (0) target = $region21
    $region20: #{tpu_custom_call.1} parent=1 // pred_region
      %87 = vsyncadd [#allocation4], 0
      %s88 = sshll.u32 [#allocation7], 4
      %s89 = int_to_ptr.vmem [resolvable:$true] %s88
      %s90 = sshll.u32 %s2, 4
      %s91 = int_to_ptr.hbm [resolvable:$true] %s90
      %96 = dma.vmem_to_hbm [thread:$0]  %s89, 256, %s91, [#allocation4], 128, 128, 8
    $region21: #{tpu_custom_call.1} parent=1 // pred_fallthru
      _
    // Predicated region
    $region22: #{tpu_custom_call.1} parent=1 // pred_check
      _
    $region23: #{tpu_custom_call.1} parent=1 // pred_check_branch
      %98 = sbr.rel (0) target = $region25
    $region24: #{tpu_custom_call.1} parent=1 // pred_region
      %100 = dma.done [#allocation4], 256
    $region25: #{tpu_custom_call.1} parent=1 // pred_fallthru
      _
    %101 = vsyncpa [#allocation3], 1
    %102 = vsyncpa [#allocation6], 1
    %103 = vsyncpa [#allocation4], 1

</llo_original>
